<compile_context>
chip_gen: v5e
topology: v5e:2x2
jax: 0.10.0
libtpu: 0.0.40
codegen_flags: <defaults>
</compile_context>

<pallas_src>
import functools

import numpy as np
import jax
import jax.numpy as jnp
from jax.experimental import pallas as pl
from jax.experimental.pallas import tpu as pltpu

LANES = 128
NPAD = 2048                 # total padded cells across all scales
ROWS = NPAD // LANES        # 16
NUM_P_FIELDS = 5            # px, py, pw, ph, pobj
NUM_T_FIELDS = 6            # tx, ty, tw, th, obj_mask, noobj_mask


def _yolo_fused_kernel(pred_ref, targ_ref, out_ref, *, row_ranges, sizes,
                       lambda_box, lambda_obj):
    """Fused masked YOLO loss over all scales.

    pred_ref : (NUM_P_FIELDS*ROWS, 128) f32, field-major packing.
    targ_ref : (NUM_T_FIELDS*ROWS, 128) f32, field-major packing.
    out_ref  : (1,) f32 in SMEM -> total weighted loss.
    row_ranges / sizes / lambdas are static Python config.
    """
    def pf(i):  # field slices are ROWS(=16)-aligned -> free (8,128) views
        return pred_ref[i * ROWS:(i + 1) * ROWS, :]

    def tf(i):
        return targ_ref[i * ROWS:(i + 1) * ROWS, :]

    obj = tf(4)        # 1.0 where a target was assigned, 0 elsewhere (and in padding)
    noobj = tf(5)      # 1.0 on real unassigned cells, 0 on assigned cells AND padding

    # Box SSE: fold each coordinate's squared diff immediately (short vreg lifetimes).
    d = pf(0) - tf(0)
    sse = d * d
    d = pf(1) - tf(1)
    sse = sse + d * d
    d = pf(2) - tf(2)
    sse = sse + d * d
    d = pf(3) - tf(3)
    sse = sse + d * d

    # BCEWithLogitsLoss elements: max(x,0) - x*y + log1p(exp(-|x|))
    pobj = pf(4)
    lse = jnp.log1p(jnp.exp(-jnp.abs(pobj)))
    relu = jnp.maximum(pobj, 0.0)
    bce_pos = relu - pobj + lse      # target = 1
    bce_neg = relu + lse             # target = 0

    # Only 4 full-tile cross-lane reductions -> (ROWS, 1) columns.
    col_sse = jnp.sum(sse * obj, axis=1, keepdims=True)
    col_pos = jnp.sum(bce_pos * obj, axis=1, keepdims=True)
    col_neg = jnp.sum(bce_neg * noobj, axis=1, keepdims=True)
    col_obj = jnp.sum(obj, axis=1, keepdims=True)

    # Per-scale segments are static row ranges (scales are row-padded on pack).
    riota = jax.lax.broadcasted_iota(jnp.int32, (ROWS, 1), 0)

    loss_box = jnp.float32(0.0)
    loss_obj = jnp.float32(0.0)
    for s, (r0, r1) in enumerate(row_ranges):   # static unroll over scales
        m = ((riota >= r0) & (riota < r1)).astype(jnp.float32)   # (ROWS, 1)
        n_obj = jnp.sum(col_obj * m)
        # noobj count is exact by construction: real cells minus assigned cells.
        n_noobj = jnp.float32(sizes[s]) - n_obj
        # Guarded reciprocals: deviate from the torch reference only in the
        # degenerate empty-mask case (where the reference would yield NaN).
        inv_obj = jnp.where(n_obj > 0, 1.0 / jnp.maximum(n_obj, 1.0), 0.0)
        inv_noobj = jnp.where(n_noobj > 0, 1.0 / jnp.maximum(n_noobj, 1.0), 0.0)
        # 4 per-coordinate MSE means over obj cells share the count -> one division.
        loss_box = loss_box + jnp.sum(col_sse * m) * inv_obj
        loss_obj = (loss_obj
                    + jnp.sum(col_pos * m) * inv_obj
                    + jnp.sum(col_neg * m) * inv_noobj)

    out_ref[0] = jnp.float32(lambda_box) * loss_box + jnp.float32(lambda_obj) * loss_obj


def _build_targets_np(boxes_all, B, A, H, W, anchor_grid):
    """Vectorized NumPy target assignment (mirrors the torch loops' semantics)."""
    obj = np.zeros((B, A, H, W), np.float32)
    tx = np.zeros((B, A, H, W), np.float32)
    ty = np.zeros((B, A, H, W), np.float32)
    tw = np.zeros((B, A, H, W), np.float32)
    th = np.zeros((B, A, H, W), np.float32)
    if boxes_all.size == 0:
        return tx, ty, tw, th, obj

    boxes = boxes_all * np.array([W, H, W, H], np.float32)        # (B, Nb, 4)
    gx, gy, gw, gh = boxes[..., 0], boxes[..., 1], boxes[..., 2], boxes[..., 3]
    gi = gx.astype(np.int64)                                       # int() truncation
    gj = gy.astype(np.int64)
    valid = (gi < W) & (gj < H)

    ratios = anchor_grid[None, None, :, :] / boxes[..., None, 2:4]  # (B, Nb, A, 2)
    ious = np.minimum(ratios, 1.0 / ratios).prod(-1)                # (B, Nb, A)
    best = ious.argmax(-1)                                          # (B, Nb)
    b_idx = np.broadcast_to(np.arange(B)[:, None], gi.shape)

    sel = valid.reshape(-1)
    bb = b_idx.reshape(-1)[sel]
    aa = best.reshape(-1)[sel]
    jj = gj.reshape(-1)[sel]
    ii = gi.reshape(-1)[sel]
    # Flattened (batch, box) order matches the reference loop order; NumPy fancy
    # assignment with duplicate indices keeps the last write, matching torch.
    obj[bb, aa, jj, ii] = 1.0
    tx[bb, aa, jj, ii] = (gx - gi).reshape(-1)[sel]
    ty[bb, aa, jj, ii] = (gy - gj).reshape(-1)[sel]
    tw[bb, aa, jj, ii] = np.log(gw.reshape(-1)[sel] / anchor_grid[aa, 0] + 1e-16)
    th[bb, aa, jj, ii] = np.log(gh.reshape(-1)[sel] / anchor_grid[aa, 1] + 1e-16)
    return tx, ty, tw, th, obj


@functools.partial(jax.jit, static_argnames=("lambda_box", "lambda_obj"))
def _yolo_loss_device(preds, targ_slab, *, lambda_box, lambda_obj):
    """One fused executable: pred packing (layout ops) + the Pallas kernel."""
    parts, sizes, row_ranges = [], [], []
    off = 0
    for pred in preds:
        B, A, H, W, C = pred.shape
        n_s = B * A * H * W
        n_pad = -(-n_s // LANES) * LANES          # pad each scale to a row boundary
        sizes.append(n_s)
        row_ranges.append((off // LANES, (off + n_pad) // LANES))
        off += n_pad
        # Reproduce pred.view(B,A,C,H,W).permute(0,1,3,4,2)[..., :5], laid out
        # field-major as (5, B*A*H*W).
        p = pred.astype(jnp.float32).reshape(B, A, C, H, W)[:, :, :5]
        p = jnp.transpose(p, (2, 0, 1, 3, 4)).reshape(5, n_s)
        parts.append(jnp.pad(p, ((0, 0), (0, n_pad - n_s))))
    # TODO(synk): if the padded cell count ever exceeds NPAD (real YOLO input
    # resolutions), switch to a 1-D grid over 2048-cell blocks with scalar
    # accumulators instead of growing the single resident tile.
    assert off <= NPAD, "all scales must fit in the single 2048-cell tile"

    pred_flat = jnp.concatenate(parts, axis=1)                      # (5, off)
    pred_slab = jnp.pad(pred_flat, ((0, 0), (0, NPAD - off))
                        ).reshape(NUM_P_FIELDS * ROWS, LANES)

    kernel = functools.partial(
        _yolo_fused_kernel,
        row_ranges=tuple(row_ranges), sizes=tuple(sizes),
        lambda_box=lambda_box, lambda_obj=lambda_obj)

    total = pl.pallas_call(
        kernel,
        out_shape=jax.ShapeDtypeStruct((1,), jnp.float32),
        in_specs=[pl.BlockSpec(memory_space=pltpu.MemorySpace.VMEM),
                  pl.BlockSpec(memory_space=pltpu.MemorySpace.VMEM)],
        out_specs=pl.BlockSpec(memory_space=pltpu.MemorySpace.SMEM),
    )(pred_slab, targ_slab.astype(jnp.float32))
    return total[0]


def yolo_loss(predictions, boxes, labels, scaled_anchors, num_classes=1,
              lambda_box=0.05, lambda_obj=1.0, lambda_cls=0.5):
    # TODO(synk): target assignment is data-dependent scatter (per-box best-anchor
    # argmax + integer grid indexing with last-write-wins), so it stays on the host
    # in (vectorized) NumPy, matching the torch reference's Python loops.
    boxes_np = np.asarray(boxes, np.float32)
    _labels_np = np.asarray(labels, np.int64)   # only needed for num_classes > 1
    anchors_np = np.asarray(scaled_anchors, np.float32)

    # Build the target slab on the host: fields tx, ty, tw, th, obj, noobj,
    # each scale padded to a 128-lane row boundary (padding contributes zero).
    targ = np.zeros((NUM_T_FIELDS, NPAD), np.float32)
    off = 0
    for scale_idx, pred in enumerate(predictions):
        B, A, H, W, C = pred.shape
        n_s = B * A * H * W
        n_pad = -(-n_s // LANES) * LANES
        tx, ty, tw, th, obj = _build_targets_np(
            boxes_np, B, A, H, W, anchors_np[scale_idx])
        targ[0, off:off + n_s] = tx.reshape(-1)
        targ[1, off:off + n_s] = ty.reshape(-1)
        targ[2, off:off + n_s] = tw.reshape(-1)
        targ[3, off:off + n_s] = th.reshape(-1)
        targ[4, off:off + n_s] = obj.reshape(-1)
        targ[5, off:off + n_s] = 1.0 - obj.reshape(-1)
        off += n_pad
    assert off <= NPAD, "all scales must fit in the single 2048-cell tile"
    targ_slab = targ.reshape(NUM_T_FIELDS * ROWS, LANES)

    # TODO(synk): per-class BCE term only applies when num_classes > 1 (as in the
    # reference); with num_classes == 1 it is identically zero and not lowered, so
    # lambda_cls is accepted but unused here.
    return _yolo_loss_device(tuple(predictions), targ_slab,
                             lambda_box=float(lambda_box),
                             lambda_obj=float(lambda_obj))


if __name__ == "__main__":
    B, A, C = 2, 3, 6            # C = 5 + num_classes, num_classes = 1
    num_classes = 1
    NBOX = 3

    key = jax.random.PRNGKey(0)
    kp, kxy, kwh = jax.random.split(key, 3)

    shapes = [(B, A, 16, 16, C), (B, A, 8, 8, C), (B, A, 4, 4, C)]  # strides 8/16/32
    predictions = [jax.random.normal(jax.random.fold_in(kp, i), s, jnp.float32)
                   for i, s in enumerate(shapes)]

    # Synthetic targets: normalized (cx, cy, w, h) boxes + class-0 labels per image.
    cxy = jax.random.uniform(kxy, (B, NBOX, 2), minval=0.1, maxval=0.9)
    wh = jax.random.uniform(kwh, (B, NBOX, 2), minval=0.05, maxval=0.3)
    boxes = jnp.concatenate([cxy, wh], axis=-1)
    labels = jnp.zeros((B, NBOX), jnp.int32)

    # Deterministic "parameters": yolov5s scaled anchors (anchors * stride), in pixels.
    scaled_anchors = jnp.array(
        [[[10., 13.], [16., 30.], [33., 23.]],
         [[30., 61.], [62., 45.], [59., 119.]],
         [[116., 90.], [156., 198.], [373., 326.]]], jnp.float32)

    total = yolo_loss(predictions, boxes, labels, scaled_anchors, num_classes)
    total = jax.block_until_ready(total)
    assert np.isfinite(float(total))
    print("KERNEL_OK")
</pallas_src>

<mosaic_0001>
module attributes {stable_mosaic.version = 11 : i64} {
  func.func @_yolo_fused_kernel(%arg0: memref<80x128xf32, #tpu.memory_space<vmem>>, %arg1: memref<96x128xf32, #tpu.memory_space<vmem>>, %arg2: memref<1xf32, #tpu.memory_space<smem>>) attributes {dimension_semantics = [], scalar_prefetch = 0 : i64, scratch_operands = 0 : i64, tpu.core_type = #tpu.core_type<tc>} {
    %c64 = arith.constant 64 : index
    %c0 = arith.constant 0 : index
    %0 = vector.load %arg1[%c64, %c0] : memref<96x128xf32, #tpu.memory_space<vmem>>, vector<16x128xf32>
    %c80 = arith.constant 80 : index
    %c0_0 = arith.constant 0 : index
    %1 = vector.load %arg1[%c80, %c0_0] : memref<96x128xf32, #tpu.memory_space<vmem>>, vector<16x128xf32>
    %c0_1 = arith.constant 0 : index
    %c0_2 = arith.constant 0 : index
    %2 = vector.load %arg0[%c0_1, %c0_2] : memref<80x128xf32, #tpu.memory_space<vmem>>, vector<16x128xf32>
    %c0_3 = arith.constant 0 : index
    %c0_4 = arith.constant 0 : index
    %3 = vector.load %arg1[%c0_3, %c0_4] : memref<96x128xf32, #tpu.memory_space<vmem>>, vector<16x128xf32>
    %4 = arith.subf %2, %3 : vector<16x128xf32>
    %5 = arith.mulf %4, %4 : vector<16x128xf32>
    %c16 = arith.constant 16 : index
    %c0_5 = arith.constant 0 : index
    %6 = vector.load %arg0[%c16, %c0_5] : memref<80x128xf32, #tpu.memory_space<vmem>>, vector<16x128xf32>
    %c16_6 = arith.constant 16 : index
    %c0_7 = arith.constant 0 : index
    %7 = vector.load %arg1[%c16_6, %c0_7] : memref<96x128xf32, #tpu.memory_space<vmem>>, vector<16x128xf32>
    %8 = arith.subf %6, %7 : vector<16x128xf32>
    %9 = arith.mulf %8, %8 : vector<16x128xf32>
    %10 = arith.addf %5, %9 : vector<16x128xf32>
    %c32 = arith.constant 32 : index
    %c0_8 = arith.constant 0 : index
    %11 = vector.load %arg0[%c32, %c0_8] : memref<80x128xf32, #tpu.memory_space<vmem>>, vector<16x128xf32>
    %c32_9 = arith.constant 32 : index
    %c0_10 = arith.constant 0 : index
    %12 = vector.load %arg1[%c32_9, %c0_10] : memref<96x128xf32, #tpu.memory_space<vmem>>, vector<16x128xf32>
    %13 = arith.subf %11, %12 : vector<16x128xf32>
    %14 = arith.mulf %13, %13 : vector<16x128xf32>
    %15 = arith.addf %10, %14 : vector<16x128xf32>
    %c48 = arith.constant 48 : index
    %c0_11 = arith.constant 0 : index
    %16 = vector.load %arg0[%c48, %c0_11] : memref<80x128xf32, #tpu.memory_space<vmem>>, vector<16x128xf32>
    %c48_12 = arith.constant 48 : index
    %c0_13 = arith.constant 0 : index
    %17 = vector.load %arg1[%c48_12, %c0_13] : memref<96x128xf32, #tpu.memory_space<vmem>>, vector<16x128xf32>
    %18 = arith.subf %16, %17 : vector<16x128xf32>
    %19 = arith.mulf %18, %18 : vector<16x128xf32>
    %20 = arith.addf %15, %19 : vector<16x128xf32>
    %c64_14 = arith.constant 64 : index
    %c0_15 = arith.constant 0 : index
    %21 = vector.load %arg0[%c64_14, %c0_15] : memref<80x128xf32, #tpu.memory_space<vmem>>, vector<16x128xf32>
    %22 = math.absf %21 : vector<16x128xf32>
    %cst = arith.constant 0.000000e+00 : f32
    %23 = vector.broadcast %cst : f32 to vector<16x128xf32>
    %24 = arith.subf %23, %22 : vector<16x128xf32>
    %25 = math.exp %24 : vector<16x128xf32>
    %26 = math.log1p %25 : vector<16x128xf32>
    %cst_16 = arith.constant 0.000000e+00 : f32
    %27 = vector.broadcast %cst_16 : f32 to vector<16x128xf32>
    %28 = arith.maximumf %21, %27 : vector<16x128xf32>
    %29 = arith.subf %28, %21 : vector<16x128xf32>
    %30 = arith.addf %29, %26 : vector<16x128xf32>
    %31 = arith.addf %28, %26 : vector<16x128xf32>
    %32 = arith.mulf %20, %0 : vector<16x128xf32>
    %cst_17 = arith.constant dense<0.000000e+00> : vector<16xf32>
    %33 = vector.multi_reduction <add>, %32, %cst_17 [1] : vector<16x128xf32> to vector<16xf32>
    %34 = vector.shape_cast %33 : vector<16xf32> to vector<16x1xf32>
    %35 = arith.mulf %30, %0 : vector<16x128xf32>
    %cst_18 = arith.constant dense<0.000000e+00> : vector<16xf32>
    %36 = vector.multi_reduction <add>, %35, %cst_18 [1] : vector<16x128xf32> to vector<16xf32>
    %37 = vector.shape_cast %36 : vector<16xf32> to vector<16x1xf32>
    %38 = arith.mulf %31, %1 : vector<16x128xf32>
    %cst_19 = arith.constant dense<0.000000e+00> : vector<16xf32>
    %39 = vector.multi_reduction <add>, %38, %cst_19 [1] : vector<16x128xf32> to vector<16xf32>
    %40 = vector.shape_cast %39 : vector<16xf32> to vector<16x1xf32>
    %cst_20 = arith.constant dense<0.000000e+00> : vector<16xf32>
    %41 = vector.multi_reduction <add>, %0, %cst_20 [1] : vector<16x128xf32> to vector<16xf32>
    %42 = vector.shape_cast %41 : vector<16xf32> to vector<16x1xf32>
    %43 = tpu.iota {dimensions = array<i32: 0>} : vector<16x1xi32>
    %c0_i32 = arith.constant 0 : i32
    %44 = vector.broadcast %c0_i32 : i32 to vector<16x1xi32>
    %45 = arith.cmpi sge, %43, %44 : vector<16x1xi32>
    %c12_i32 = arith.constant 12 : i32
    %46 = vector.broadcast %c12_i32 : i32 to vector<16x1xi32>
    %47 = arith.cmpi slt, %43, %46 : vector<16x1xi32>
    %48 = arith.andi %45, %47 : vector<16x1xi1>
    %49 = arith.extui %48 : vector<16x1xi1> to vector<16x1xi32>
    %50 = arith.sitofp %49 : vector<16x1xi32> to vector<16x1xf32>
    %51 = arith.mulf %42, %50 : vector<16x1xf32>
    %52 = vector.shape_cast %51 : vector<16x1xf32> to vector<1x16x1xf32>
    %cst_21 = arith.constant dense<0.000000e+00> : vector<1xf32>
    %53 = vector.multi_reduction <add>, %52, %cst_21 [1, 2] : vector<1x16x1xf32> to vector<1xf32>
    %54 = vector.shape_cast %53 : vector<1xf32> to vector<1x1x1xf32>
    %55 = vector.extract %54[0, 0, 0] : f32 from vector<1x1x1xf32>
    %cst_22 = arith.constant 1.536000e+03 : f32
    %56 = arith.subf %cst_22, %55 : f32
    %cst_23 = arith.constant 0.000000e+00 : f32
    %57 = arith.cmpf ogt, %55, %cst_23 : f32
    %cst_24 = arith.constant 1.000000e+00 : f32
    %58 = arith.maximumf %55, %cst_24 : f32
    %cst_25 = arith.constant 1.000000e+00 : f32
    %59 = arith.divf %cst_25, %58 : f32
    %cst_26 = arith.constant 0.000000e+00 : f32
    %60 = arith.select %57, %59, %cst_26 : f32
    %cst_27 = arith.constant 0.000000e+00 : f32
    %61 = arith.cmpf ogt, %56, %cst_27 : f32
    %cst_28 = arith.constant 1.000000e+00 : f32
    %62 = arith.maximumf %56, %cst_28 : f32
    %cst_29 = arith.constant 1.000000e+00 : f32
    %63 = arith.divf %cst_29, %62 : f32
    %cst_30 = arith.constant 0.000000e+00 : f32
    %64 = arith.select %61, %63, %cst_30 : f32
    %65 = arith.mulf %34, %50 : vector<16x1xf32>
    %66 = vector.shape_cast %65 : vector<16x1xf32> to vector<1x16x1xf32>
    %cst_31 = arith.constant dense<0.000000e+00> : vector<1xf32>
    %67 = vector.multi_reduction <add>, %66, %cst_31 [1, 2] : vector<1x16x1xf32> to vector<1xf32>
    %68 = vector.shape_cast %67 : vector<1xf32> to vector<1x1x1xf32>
    %69 = vector.extract %68[0, 0, 0] : f32 from vector<1x1x1xf32>
    %70 = arith.mulf %69, %60 : f32
    %cst_32 = arith.constant 0.000000e+00 : f32
    %71 = arith.addf %cst_32, %70 : f32
    %72 = arith.mulf %37, %50 : vector<16x1xf32>
    %73 = vector.shape_cast %72 : vector<16x1xf32> to vector<1x16x1xf32>
    %cst_33 = arith.constant dense<0.000000e+00> : vector<1xf32>
    %74 = vector.multi_reduction <add>, %73, %cst_33 [1, 2] : vector<1x16x1xf32> to vector<1xf32>
    %75 = vector.shape_cast %74 : vector<1xf32> to vector<1x1x1xf32>
    %76 = vector.extract %75[0, 0, 0] : f32 from vector<1x1x1xf32>
    %77 = arith.mulf %76, %60 : f32
    %cst_34 = arith.constant 0.000000e+00 : f32
    %78 = arith.addf %cst_34, %77 : f32
    %79 = arith.mulf %40, %50 : vector<16x1xf32>
    %80 = vector.shape_cast %79 : vector<16x1xf32> to vector<1x16x1xf32>
    %cst_35 = arith.constant dense<0.000000e+00> : vector<1xf32>
    %81 = vector.multi_reduction <add>, %80, %cst_35 [1, 2] : vector<1x16x1xf32> to vector<1xf32>
    %82 = vector.shape_cast %81 : vector<1xf32> to vector<1x1x1xf32>
    %83 = vector.extract %82[0, 0, 0] : f32 from vector<1x1x1xf32>
    %84 = arith.mulf %83, %64 : f32
    %85 = arith.addf %78, %84 : f32
    %c12_i32_36 = arith.constant 12 : i32
    %86 = vector.broadcast %c12_i32_36 : i32 to vector<16x1xi32>
    %87 = arith.cmpi sge, %43, %86 : vector<16x1xi32>
    %c15_i32 = arith.constant 15 : i32
    %88 = vector.broadcast %c15_i32 : i32 to vector<16x1xi32>
    %89 = arith.cmpi slt, %43, %88 : vector<16x1xi32>
    %90 = arith.andi %87, %89 : vector<16x1xi1>
    %91 = arith.extui %90 : vector<16x1xi1> to vector<16x1xi32>
    %92 = arith.sitofp %91 : vector<16x1xi32> to vector<16x1xf32>
    %93 = arith.mulf %42, %92 : vector<16x1xf32>
    %94 = vector.shape_cast %93 : vector<16x1xf32> to vector<1x16x1xf32>
    %cst_37 = arith.constant dense<0.000000e+00> : vector<1xf32>
    %95 = vector.multi_reduction <add>, %94, %cst_37 [1, 2] : vector<1x16x1xf32> to vector<1xf32>
    %96 = vector.shape_cast %95 : vector<1xf32> to vector<1x1x1xf32>
    %97 = vector.extract %96[0, 0, 0] : f32 from vector<1x1x1xf32>
    %cst_38 = arith.constant 3.840000e+02 : f32
    %98 = arith.subf %cst_38, %97 : f32
    %cst_39 = arith.constant 0.000000e+00 : f32
    %99 = arith.cmpf ogt, %97, %cst_39 : f32
    %cst_40 = arith.constant 1.000000e+00 : f32
    %100 = arith.maximumf %97, %cst_40 : f32
    %cst_41 = arith.constant 1.000000e+00 : f32
    %101 = arith.divf %cst_41, %100 : f32
    %cst_42 = arith.constant 0.000000e+00 : f32
    %102 = arith.select %99, %101, %cst_42 : f32
    %cst_43 = arith.constant 0.000000e+00 : f32
    %103 = arith.cmpf ogt, %98, %cst_43 : f32
    %cst_44 = arith.constant 1.000000e+00 : f32
    %104 = arith.maximumf %98, %cst_44 : f32
    %cst_45 = arith.constant 1.000000e+00 : f32
    %105 = arith.divf %cst_45, %104 : f32
    %cst_46 = arith.constant 0.000000e+00 : f32
    %106 = arith.select %103, %105, %cst_46 : f32
    %107 = arith.mulf %34, %92 : vector<16x1xf32>
    %108 = vector.shape_cast %107 : vector<16x1xf32> to vector<1x16x1xf32>
    %cst_47 = arith.constant dense<0.000000e+00> : vector<1xf32>
    %109 = vector.multi_reduction <add>, %108, %cst_47 [1, 2] : vector<1x16x1xf32> to vector<1xf32>
    %110 = vector.shape_cast %109 : vector<1xf32> to vector<1x1x1xf32>
    %111 = vector.extract %110[0, 0, 0] : f32 from vector<1x1x1xf32>
    %112 = arith.mulf %111, %102 : f32
    %113 = arith.addf %71, %112 : f32
    %114 = arith.mulf %37, %92 : vector<16x1xf32>
    %115 = vector.shape_cast %114 : vector<16x1xf32> to vector<1x16x1xf32>
    %cst_48 = arith.constant dense<0.000000e+00> : vector<1xf32>
    %116 = vector.multi_reduction <add>, %115, %cst_48 [1, 2] : vector<1x16x1xf32> to vector<1xf32>
    %117 = vector.shape_cast %116 : vector<1xf32> to vector<1x1x1xf32>
    %118 = vector.extract %117[0, 0, 0] : f32 from vector<1x1x1xf32>
    %119 = arith.mulf %118, %102 : f32
    %120 = arith.addf %85, %119 : f32
    %121 = arith.mulf %40, %92 : vector<16x1xf32>
    %122 = vector.shape_cast %121 : vector<16x1xf32> to vector<1x16x1xf32>
    %cst_49 = arith.constant dense<0.000000e+00> : vector<1xf32>
    %123 = vector.multi_reduction <add>, %122, %cst_49 [1, 2] : vector<1x16x1xf32> to vector<1xf32>
    %124 = vector.shape_cast %123 : vector<1xf32> to vector<1x1x1xf32>
    %125 = vector.extract %124[0, 0, 0] : f32 from vector<1x1x1xf32>
    %126 = arith.mulf %125, %106 : f32
    %127 = arith.addf %120, %126 : f32
    %c15_i32_50 = arith.constant 15 : i32
    %128 = vector.broadcast %c15_i32_50 : i32 to vector<16x1xi32>
    %129 = arith.cmpi sge, %43, %128 : vector<16x1xi32>
    %c16_i32 = arith.constant 16 : i32
    %130 = vector.broadcast %c16_i32 : i32 to vector<16x1xi32>
    %131 = arith.cmpi slt, %43, %130 : vector<16x1xi32>
    %132 = arith.andi %129, %131 : vector<16x1xi1>
    %133 = arith.extui %132 : vector<16x1xi1> to vector<16x1xi32>
    %134 = arith.sitofp %133 : vector<16x1xi32> to vector<16x1xf32>
    %135 = arith.mulf %42, %134 : vector<16x1xf32>
    %136 = vector.shape_cast %135 : vector<16x1xf32> to vector<1x16x1xf32>
    %cst_51 = arith.constant dense<0.000000e+00> : vector<1xf32>
    %137 = vector.multi_reduction <add>, %136, %cst_51 [1, 2] : vector<1x16x1xf32> to vector<1xf32>
    %138 = vector.shape_cast %137 : vector<1xf32> to vector<1x1x1xf32>
    %139 = vector.extract %138[0, 0, 0] : f32 from vector<1x1x1xf32>
    %cst_52 = arith.constant 9.600000e+01 : f32
    %140 = arith.subf %cst_52, %139 : f32
    %cst_53 = arith.constant 0.000000e+00 : f32
    %141 = arith.cmpf ogt, %139, %cst_53 : f32
    %cst_54 = arith.constant 1.000000e+00 : f32
    %142 = arith.maximumf %139, %cst_54 : f32
    %cst_55 = arith.constant 1.000000e+00 : f32
    %143 = arith.divf %cst_55, %142 : f32
    %cst_56 = arith.constant 0.000000e+00 : f32
    %144 = arith.select %141, %143, %cst_56 : f32
    %cst_57 = arith.constant 0.000000e+00 : f32
    %145 = arith.cmpf ogt, %140, %cst_57 : f32
    %cst_58 = arith.constant 1.000000e+00 : f32
    %146 = arith.maximumf %140, %cst_58 : f32
    %cst_59 = arith.constant 1.000000e+00 : f32
    %147 = arith.divf %cst_59, %146 : f32
    %cst_60 = arith.constant 0.000000e+00 : f32
    %148 = arith.select %145, %147, %cst_60 : f32
    %149 = arith.mulf %34, %134 : vector<16x1xf32>
    %150 = vector.shape_cast %149 : vector<16x1xf32> to vector<1x16x1xf32>
    %cst_61 = arith.constant dense<0.000000e+00> : vector<1xf32>
    %151 = vector.multi_reduction <add>, %150, %cst_61 [1, 2] : vector<1x16x1xf32> to vector<1xf32>
    %152 = vector.shape_cast %151 : vector<1xf32> to vector<1x1x1xf32>
    %153 = vector.extract %152[0, 0, 0] : f32 from vector<1x1x1xf32>
    %154 = arith.mulf %153, %144 : f32
    %155 = arith.addf %113, %154 : f32
    %156 = arith.mulf %37, %134 : vector<16x1xf32>
    %157 = vector.shape_cast %156 : vector<16x1xf32> to vector<1x16x1xf32>
    %cst_62 = arith.constant dense<0.000000e+00> : vector<1xf32>
    %158 = vector.multi_reduction <add>, %157, %cst_62 [1, 2] : vector<1x16x1xf32> to vector<1xf32>
    %159 = vector.shape_cast %158 : vector<1xf32> to vector<1x1x1xf32>
    %160 = vector.extract %159[0, 0, 0] : f32 from vector<1x1x1xf32>
    %161 = arith.mulf %160, %144 : f32
    %162 = arith.addf %127, %161 : f32
    %163 = arith.mulf %40, %134 : vector<16x1xf32>
    %164 = vector.shape_cast %163 : vector<16x1xf32> to vector<1x16x1xf32>
    %cst_63 = arith.constant dense<0.000000e+00> : vector<1xf32>
    %165 = vector.multi_reduction <add>, %164, %cst_63 [1, 2] : vector<1x16x1xf32> to vector<1xf32>
    %166 = vector.shape_cast %165 : vector<1xf32> to vector<1x1x1xf32>
    %167 = vector.extract %166[0, 0, 0] : f32 from vector<1x1x1xf32>
    %168 = arith.mulf %167, %148 : f32
    %169 = arith.addf %162, %168 : f32
    %cst_64 = arith.constant 5.000000e-02 : f32
    %170 = arith.mulf %cst_64, %155 : f32
    %cst_65 = arith.constant 1.000000e+00 : f32
    %171 = arith.mulf %cst_65, %169 : f32
    %172 = arith.addf %170, %171 : f32
    %c0_66 = arith.constant 0 : index
    %173 = memref.load %arg2[%c0_66] : memref<1xf32, #tpu.memory_space<smem>>
    memref.store %172, %arg2[%c0_66] : memref<1xf32, #tpu.memory_space<smem>>
    return
  }
}

</mosaic_0001>

<llo_original>
// kernel: _yolo_loss_device.1
$region0: #{_yolo_loss_device.1}
  #allocation0 [shape = 'u32[]', space=smem, size = 0x4, offset = 0x4, fixed_abs, tag = 'smem constant byte address 0x4 - core index']
  #allocation1 [shape = 'u32[72,128]{1,0:T(1,128)}', space=vmem, size = 0x9000, scoped, tag = 'internal scratch']
  %s0 = inlined_call_operand.vmem [shape: f32[80,128], index: 0, kind: input, shape index: {}]
  %s1 = inlined_call_operand.vmem [shape: f32[96,128], index: 1, kind: input, shape index: {}]
  %s2 = inlined_call_operand.hbm [shape: f32[1], index: 2, kind: output, shape index: {}]
  %s3 = sld [smem:[#allocation0]]
  $region18: #{_yolo_loss_device.1} parent=0
    _
  %s5 = ssub.s32 1, %s3
  %s6 = scalar_select 0, %s5, %s3
  $region1: #{_yolo_loss_device.1} parent=0
    #allocation2 [shape = 'u8[512]{0}', space=smem, size = 0x200, scoped, tag = 'output window, operand 0, single buffered']
    #allocation3 [shape = 's32[1]{0}', space=sflag, size = 0x4, scoped, tag = 'scoped memory for _yolo_loss_device.1']
    %7 = vsyncpa [#allocation3], 0
    // Predicated region
    $region2: #{_yolo_loss_device.1} parent=1 // pred_check
      _
    $region3: #{_yolo_loss_device.1} parent=1 // pred_check_branch
      %9 = sbr.rel (0) target = $region5
    $region4: #{_yolo_loss_device.1} parent=1 // pred_region
      _
    $region5: #{_yolo_loss_device.1} parent=1 // pred_fallthru
      _
    // Predicated region
    $region6: #{_yolo_loss_device.1} parent=1 // pred_check
      _
    $region7: #{_yolo_loss_device.1} parent=1 // pred_check_branch
      %11 = sbr.rel (0) target = $region9
    $region8: #{_yolo_loss_device.1} parent=1 // pred_region
      _
    $region9: #{_yolo_loss_device.1} parent=1 // pred_fallthru
      _
    %v12 = vld [vmem:[%s1 + $0x40] sm:$0xff]
    %v13 = vld [vmem:[%s1 + $0x48] sm:$0xff]
    %v14 = vld [vmem:[%s1 + $0x50] sm:$0xff]
    %v15 = vld [vmem:[%s1 + $0x58] sm:$0xff]
    %v16 = vld [vmem:[%s0] sm:$0xff]
    %v17 = vld [vmem:[%s0 + $0x8] sm:$0xff]
    %v18 = vld [vmem:[%s1] sm:$0xff]
    %v19 = vld [vmem:[%s1 + $0x8] sm:$0xff]
    %v20 = vsub.f32 %v16, %v18
    %v21 = vsub.f32 %v17, %v19
    %v22 = vmul.f32 %v20, %v20
    %v23 = vmul.f32 %v21, %v21
    %v24 = vld [vmem:[%s0 + $0x10] sm:$0xff]
    %v25 = vld [vmem:[%s0 + $0x18] sm:$0xff]
    %v26 = vld [vmem:[%s1 + $0x10] sm:$0xff]
    %v27 = vld [vmem:[%s1 + $0x18] sm:$0xff]
    %v28 = vsub.f32 %v24, %v26
    %v29 = vsub.f32 %v25, %v27
    %v30 = vmul.f32 %v28, %v28
    %v31 = vmul.f32 %v29, %v29
    %v32 = vadd.f32 %v22, %v30
    %v33 = vadd.f32 %v23, %v31
    %v34 = vld [vmem:[%s0 + $0x20] sm:$0xff]
    %v35 = vld [vmem:[%s0 + $0x28] sm:$0xff]
    %v36 = vld [vmem:[%s1 + $0x20] sm:$0xff]
    %v37 = vld [vmem:[%s1 + $0x28] sm:$0xff]
    %v38 = vsub.f32 %v34, %v36
    %v39 = vsub.f32 %v35, %v37
    %v40 = vmul.f32 %v38, %v38
    %v41 = vmul.f32 %v39, %v39
    %v42 = vadd.f32 %v32, %v40
    %v43 = vadd.f32 %v33, %v41
    %v44 = vld [vmem:[%s0 + $0x30] sm:$0xff]
    %v45 = vld [vmem:[%s0 + $0x38] sm:$0xff]
    %v46 = vld [vmem:[%s1 + $0x30] sm:$0xff]
    %v47 = vld [vmem:[%s1 + $0x38] sm:$0xff]
    %v48 = vsub.f32 %v44, %v46
    %v49 = vsub.f32 %v45, %v47
    %v50 = vmul.f32 %v48, %v48
    %v51 = vmul.f32 %v49, %v49
    %v52 = vadd.f32 %v42, %v50
    %v53 = vadd.f32 %v43, %v51
    %v54 = vld [vmem:[%s0 + $0x40] sm:$0xff]
    %v55 = vld [vmem:[%s0 + $0x48] sm:$0xff]
    %v56 = vand.u32 2147483647, %v54
    %v57 = vand.u32 2147483647, %v55
    %v58 = vsub.f32 0.0, %v56
    %v59 = vsub.f32 0.0, %v57
    %v60 = vmul.f32 %v58, 1.442695
    %v61 = vpow.pop %v60
    %v62 = vmul.f32 %v59, 1.442695
    %v63 = vpow.pop %v62
    %v64 = vadd.f32 %v61, 1.0
    %v65 = vlog2.pop %v64
    %v66 = vmul.f32 %v65, 0.6931472
    %v67 = vmul.f32 -0.5, %v61
    %v68 = vadd.f32 %v67, 1.0
    %v69 = vmul.f32 %v68, %v61
    %v70 = vand.u32 2147483647, %v61
    %vm71 = vcmp.lt.f32.partialorder %v70, 0.0004427343
    %v72 = vsel %vm71, %v69, %v66
    %v73 = vadd.f32 %v63, 1.0
    %v74 = vlog2.pop %v73
    %v75 = vmul.f32 %v74, 0.6931472
    %v76 = vmul.f32 -0.5, %v63
    %v77 = vadd.f32 %v76, 1.0
    %v78 = vmul.f32 %v77, %v63
    %v79 = vand.u32 2147483647, %v63
    %vm80 = vcmp.lt.f32.partialorder %v79, 0.0004427343
    %v81 = vsel %vm80, %v78, %v75
    %v82 = vmax.f32 %v54, 0.0
    %v83 = vmax.f32 %v55, 0.0
    %v84 = vsub.f32 %v82, %v54
    %v85 = vsub.f32 %v83, %v55
    %v86 = vadd.f32 %v84, %v72
    %v87 = vadd.f32 %v85, %v81
    %v88 = vadd.f32 %v82, %v72
    %v89 = vadd.f32 %v83, %v81
    %v90 = vmul.f32 %v52, %v12
    %v91 = vmul.f32 %v53, %v13
    %92 = vadd.xlane.f32.xlu0 %v90
    %v93 = vpop.xlane.xlu0 %92
    %94 = vadd.xlane.f32.xlu0 %v91
    %v95 = vpop.xlane.xlu0 %94
    %v96 = vmul.f32 %v86, %v12
    %v97 = vmul.f32 %v87, %v13
    %98 = vadd.xlane.f32.xlu0 %v96
    %v99 = vpop.xlane.xlu0 %98
    %100 = vadd.xlane.f32.xlu0 %v97
    %v101 = vpop.xlane.xlu0 %100
    %v102 = vmul.f32 %v88, %v14
    %v103 = vmul.f32 %v89, %v15
    %104 = vadd.xlane.f32.xlu0 %v102
    %v105 = vpop.xlane.xlu0 %104
    %106 = vadd.xlane.f32.xlu0 %v103
    %v107 = vpop.xlane.xlu0 %106
    %108 = vadd.xlane.f32.xlu0 %v12
    %v109 = vpop.xlane.xlu0 %108
    %110 = vadd.xlane.f32.xlu0 %v13
    %v111 = vpop.xlane.xlu0 %110
    %v112 = vlaneseq
    %v113 = vshrl.u32 %v112, 7
    %v114 = vadd.s32 %v113, 8
    %vm115 = vcmp.ge.s32.totalorder %v113, 0
    %vm116 = vcmp.ge.s32.totalorder %v114, 0
    %vm117 = vcmp.lt.s32.totalorder %v113, 12
    %vm118 = vcmp.lt.s32.totalorder %v114, 12
    %vm119 = vmand %vm115, %vm117
    %vm120 = vmand %vm116, %vm118
    %v121 = vsel %vm119, 1, 0
    %v122 = vsel %vm120, 1, 0
    %v123 = vcvt.s32.f32 %v121
    %v124 = vcvt.s32.f32 %v122
    %v125 = vmul.f32 %v109, %v123
    %v126 = vmul.f32 %v111, %v124
    %vm127 = vcmask 7168
    %v128 = vsel %vm127, %v125, 0.0
    %v129 = vsel %vm127, %v126, 0.0
    %v130 = vadd.f32 %v128, %v129
    %131 = vadd.xlane.f32.xlu0 %v130
    %v132 = vpop.xlane.xlu0 %131
    %v133 = vrot.slane %v132, 4
    %v134 = vadd.f32 %v132, %v133
    %v135 = vrot.slane %v134, 2
    %v136 = vadd.f32 %v134, %v135
    %v137 = vrot.slane %v136, 1
    %v138 = vadd.f32 %v136, %v137
    %s139 = vtos %v138
    %s140 = ssub.f32 1536.0, %s139
    %p141 = scmp.gt.f32.partialorder %s139, 0.0
    %s142 = smax.f32 %s139, 1.0
    %v143 = vstv %s142
    %v144 = vrcp.pop %v143
    %v145 = vmul.f32 %v143, %v144
    %v146 = vsub.f32 1.0, %v145
    %v147 = vmul.f32 %v144, %v146
    %v148 = vadd.f32 %v144, %v147
    %vm149 = vweird.f32 %v143
    %vm150 = vweird.f32 %v144
    %vm151 = vmor %vm149, %vm150
    %v152 = vsel %vm151, %v144, %v148
    %v153 = vand.u32 2147483647, %v143
    %vm154 = vcmp.eq.f32.partialorder %v153, 8.507059e+37
    %v155 = vand.u32 %v143, 2147483648
    %v156 = vor.u32 1.1754944e-38, %v155
    %v157 = vsel %vm154, %v156, %v152
    %s158 = vtos %v157
    %s159 = scalar_select %p141, %s158, 0.0
    %p160 = scmp.gt.f32.partialorder %s140, 0.0
    %s161 = smax.f32 %s140, 1.0
    %v162 = vstv %s161
    %v163 = vrcp.pop %v162
    %v164 = vmul.f32 %v162, %v163
    %v165 = vsub.f32 1.0, %v164
    %v166 = vmul.f32 %v163, %v165
    %v167 = vadd.f32 %v163, %v166
    %vm168 = vweird.f32 %v162
    %vm169 = vweird.f32 %v163
    %vm170 = vmor %vm168, %vm169
    %v171 = vsel %vm170, %v163, %v167
    %v172 = vand.u32 2147483647, %v162
    %vm173 = vcmp.eq.f32.partialorder %v172, 8.507059e+37
    %v174 = vand.u32 %v162, 2147483648
    %v175 = vor.u32 1.1754944e-38, %v174
    %v176 = vsel %vm173, %v175, %v171
    %s177 = vtos %v176
    %s178 = scalar_select %p160, %s177, 0.0
    %v179 = vmul.f32 %v93, %v123
    %v180 = vmul.f32 %v95, %v124
    %v181 = vsel %vm127, %v179, 0.0
    %v182 = vsel %vm127, %v180, 0.0
    %v183 = vadd.f32 %v181, %v182
    %184 = vadd.xlane.f32.xlu0 %v183
    %v185 = vpop.xlane.xlu0 %184
    %v186 = vrot.slane %v185, 4
    %v187 = vadd.f32 %v185, %v186
    %v188 = vrot.slane %v187, 2
    %v189 = vadd.f32 %v187, %v188
    %v190 = vrot.slane %v189, 1
    %v191 = vadd.f32 %v189, %v190
    %s192 = vtos %v191
    %s193 = smul.f32 %s192, %s159
    %s194 = sadd.f32 %s193, 0.0
    %v195 = vmul.f32 %v99, %v123
    %v196 = vmul.f32 %v101, %v124
    %v197 = vsel %vm127, %v195, 0.0
    %v198 = vsel %vm127, %v196, 0.0
    %v199 = vadd.f32 %v197, %v198
    %200 = vadd.xlane.f32.xlu0 %v199
    %v201 = vpop.xlane.xlu0 %200
    %v202 = vrot.slane %v201, 4
    %v203 = vadd.f32 %v201, %v202
    %v204 = vrot.slane %v203, 2
    %v205 = vadd.f32 %v203, %v204
    %v206 = vrot.slane %v205, 1
    %v207 = vadd.f32 %v205, %v206
    %s208 = vtos %v207
    %s209 = smul.f32 %s208, %s159
    %s210 = sadd.f32 %s209, 0.0
    %v211 = vmul.f32 %v105, %v123
    %v212 = vmul.f32 %v107, %v124
    %v213 = vsel %vm127, %v211, 0.0
    %v214 = vsel %vm127, %v212, 0.0
    %v215 = vadd.f32 %v213, %v214
    %216 = vadd.xlane.f32.xlu0 %v215
    %v217 = vpop.xlane.xlu0 %216
    %v218 = vrot.slane %v217, 4
    %v219 = vadd.f32 %v217, %v218
    %v220 = vrot.slane %v219, 2
    %v221 = vadd.f32 %v219, %v220
    %v222 = vrot.slane %v221, 1
    %v223 = vadd.f32 %v221, %v222
    %s224 = vtos %v223
    %s225 = smul.f32 %s224, %s178
    %s226 = sadd.f32 %s210, %s225
    %vm227 = vcmp.ge.s32.totalorder %v113, 12
    %vm228 = vcmp.ge.s32.totalorder %v114, 12
    %vm229 = vcmp.lt.s32.totalorder %v113, 15
    %vm230 = vcmp.lt.s32.totalorder %v114, 15
    %vm231 = vmand %vm227, %vm229
    %vm232 = vmand %vm228, %vm230
    %v233 = vsel %vm231, 1, 0
    %v234 = vsel %vm232, 1, 0
    %v235 = vcvt.s32.f32 %v233
    %v236 = vcvt.s32.f32 %v234
    %v237 = vmul.f32 %v109, %v235
    %v238 = vmul.f32 %v111, %v236
    %v239 = vsel %vm127, %v237, 0.0
    %v240 = vsel %vm127, %v238, 0.0
    %v241 = vadd.f32 %v239, %v240
    %242 = vadd.xlane.f32.xlu0 %v241
    %v243 = vpop.xlane.xlu0 %242
    %v244 = vrot.slane %v243, 4
    %v245 = vadd.f32 %v243, %v244
    %v246 = vrot.slane %v245, 2
    %v247 = vadd.f32 %v245, %v246
    %v248 = vrot.slane %v247, 1
    %v249 = vadd.f32 %v247, %v248
    %s250 = vtos %v249
    %s251 = ssub.f32 384.0, %s250
    %p252 = scmp.gt.f32.partialorder %s250, 0.0
    %s253 = smax.f32 %s250, 1.0
    %v254 = vstv %s253
    %v255 = vrcp.pop %v254
    %v256 = vmul.f32 %v254, %v255
    %v257 = vsub.f32 1.0, %v256
    %v258 = vmul.f32 %v255, %v257
    %v259 = vadd.f32 %v255, %v258
    %vm260 = vweird.f32 %v254
    %vm261 = vweird.f32 %v255
    %vm262 = vmor %vm260, %vm261
    %v263 = vsel %vm262, %v255, %v259
    %v264 = vand.u32 2147483647, %v254
    %vm265 = vcmp.eq.f32.partialorder %v264, 8.507059e+37
    %v266 = vand.u32 %v254, 2147483648
    %v267 = vor.u32 1.1754944e-38, %v266
    %v268 = vsel %vm265, %v267, %v263
    %s269 = vtos %v268
    %s270 = scalar_select %p252, %s269, 0.0
    %p271 = scmp.gt.f32.partialorder %s251, 0.0
    %s272 = smax.f32 %s251, 1.0
    %v273 = vstv %s272
    %v274 = vrcp.pop %v273
    %v275 = vmul.f32 %v273, %v274
    %v276 = vsub.f32 1.0, %v275
    %v277 = vmul.f32 %v274, %v276
    %v278 = vadd.f32 %v274, %v277
    %vm279 = vweird.f32 %v273
    %vm280 = vweird.f32 %v274
    %vm281 = vmor %vm279, %vm280
    %v282 = vsel %vm281, %v274, %v278
    %v283 = vand.u32 2147483647, %v273
    %vm284 = vcmp.eq.f32.partialorder %v283, 8.507059e+37
    %v285 = vand.u32 %v273, 2147483648
    %v286 = vor.u32 1.1754944e-38, %v285
    %v287 = vsel %vm284, %v286, %v282
    %s288 = vtos %v287
    %s289 = scalar_select %p271, %s288, 0.0
    %v290 = vmul.f32 %v93, %v235
    %v291 = vmul.f32 %v95, %v236
    %v292 = vsel %vm127, %v290, 0.0
    %v293 = vsel %vm127, %v291, 0.0
    %v294 = vadd.f32 %v292, %v293
    %295 = vadd.xlane.f32.xlu0 %v294
    %v296 = vpop.xlane.xlu0 %295
    %v297 = vrot.slane %v296, 4
    %v298 = vadd.f32 %v296, %v297
    %v299 = vrot.slane %v298, 2
    %v300 = vadd.f32 %v298, %v299
    %v301 = vrot.slane %v300, 1
    %v302 = vadd.f32 %v300, %v301
    %s303 = vtos %v302
    %s304 = smul.f32 %s303, %s270
    %s305 = sadd.f32 %s194, %s304
    %v306 = vmul.f32 %v99, %v235
    %v307 = vmul.f32 %v101, %v236
    %v308 = vsel %vm127, %v306, 0.0
    %v309 = vsel %vm127, %v307, 0.0
    %v310 = vadd.f32 %v308, %v309
    %311 = vadd.xlane.f32.xlu0 %v310
    %v312 = vpop.xlane.xlu0 %311
    %v313 = vrot.slane %v312, 4
    %v314 = vadd.f32 %v312, %v313
    %v315 = vrot.slane %v314, 2
    %v316 = vadd.f32 %v314, %v315
    %v317 = vrot.slane %v316, 1
    %v318 = vadd.f32 %v316, %v317
    %s319 = vtos %v318
    %s320 = smul.f32 %s319, %s270
    %s321 = sadd.f32 %s226, %s320
    %v322 = vmul.f32 %v105, %v235
    %v323 = vmul.f32 %v107, %v236
    %v324 = vsel %vm127, %v322, 0.0
    %v325 = vsel %vm127, %v323, 0.0
    %v326 = vadd.f32 %v324, %v325
    %327 = vadd.xlane.f32.xlu0 %v326
    %v328 = vpop.xlane.xlu0 %327
    %v329 = vrot.slane %v328, 4
    %v330 = vadd.f32 %v328, %v329
    %v331 = vrot.slane %v330, 2
    %v332 = vadd.f32 %v330, %v331
    %v333 = vrot.slane %v332, 1
    %v334 = vadd.f32 %v332, %v333
    %s335 = vtos %v334
    %s336 = smul.f32 %s335, %s289
    %s337 = sadd.f32 %s321, %s336
    %vm338 = vcmp.ge.s32.totalorder %v113, 15
    %vm339 = vcmp.ge.s32.totalorder %v114, 15
    %vm340 = vcmp.lt.s32.totalorder %v113, 16
    %vm341 = vcmp.lt.s32.totalorder %v114, 16
    %vm342 = vmand %vm338, %vm340
    %vm343 = vmand %vm339, %vm341
    %v344 = vsel %vm342, 1, 0
    %v345 = vsel %vm343, 1, 0
    %v346 = vcvt.s32.f32 %v344
    %v347 = vcvt.s32.f32 %v345
    %v348 = vmul.f32 %v109, %v346
    %v349 = vmul.f32 %v111, %v347
    %v350 = vsel %vm127, %v348, 0.0
    %v351 = vsel %vm127, %v349, 0.0
    %v352 = vadd.f32 %v350, %v351
    %353 = vadd.xlane.f32.xlu0 %v352
    %v354 = vpop.xlane.xlu0 %353
    %v355 = vrot.slane %v354, 4
    %v356 = vadd.f32 %v354, %v355
    %v357 = vrot.slane %v356, 2
    %v358 = vadd.f32 %v356, %v357
    %v359 = vrot.slane %v358, 1
    %v360 = vadd.f32 %v358, %v359
    %s361 = vtos %v360
    %s362 = ssub.f32 96.0, %s361
    %p363 = scmp.gt.f32.partialorder %s361, 0.0
    %s364 = smax.f32 %s361, 1.0
    %v365 = vstv %s364
    %v366 = vrcp.pop %v365
    %v367 = vmul.f32 %v365, %v366
    %v368 = vsub.f32 1.0, %v367
    %v369 = vmul.f32 %v366, %v368
    %v370 = vadd.f32 %v366, %v369
    %vm371 = vweird.f32 %v365
    %vm372 = vweird.f32 %v366
    %vm373 = vmor %vm371, %vm372
    %v374 = vsel %vm373, %v366, %v370
    %v375 = vand.u32 2147483647, %v365
    %vm376 = vcmp.eq.f32.partialorder %v375, 8.507059e+37
    %v377 = vand.u32 %v365, 2147483648
    %v378 = vor.u32 1.1754944e-38, %v377
    %v379 = vsel %vm376, %v378, %v374
    %s380 = vtos %v379
    %s381 = scalar_select %p363, %s380, 0.0
    %p382 = scmp.gt.f32.partialorder %s362, 0.0
    %s383 = smax.f32 %s362, 1.0
    %v384 = vstv %s383
    %v385 = vrcp.pop %v384
    %v386 = vmul.f32 %v384, %v385
    %v387 = vsub.f32 1.0, %v386
    %v388 = vmul.f32 %v385, %v387
    %v389 = vadd.f32 %v385, %v388
    %vm390 = vweird.f32 %v384
    %vm391 = vweird.f32 %v385
    %vm392 = vmor %vm390, %vm391
    %v393 = vsel %vm392, %v385, %v389
    %v394 = vand.u32 2147483647, %v384
    %vm395 = vcmp.eq.f32.partialorder %v394, 8.507059e+37
    %v396 = vand.u32 %v384, 2147483648
    %v397 = vor.u32 1.1754944e-38, %v396
    %v398 = vsel %vm395, %v397, %v393
    %s399 = vtos %v398
    %s400 = scalar_select %p382, %s399, 0.0
    %v401 = vmul.f32 %v93, %v346
    %v402 = vmul.f32 %v95, %v347
    %v403 = vsel %vm127, %v401, 0.0
    %v404 = vsel %vm127, %v402, 0.0
    %v405 = vadd.f32 %v403, %v404
    %406 = vadd.xlane.f32.xlu0 %v405
    %v407 = vpop.xlane.xlu0 %406
    %v408 = vrot.slane %v407, 4
    %v409 = vadd.f32 %v407, %v408
    %v410 = vrot.slane %v409, 2
    %v411 = vadd.f32 %v409, %v410
    %v412 = vrot.slane %v411, 1
    %v413 = vadd.f32 %v411, %v412
    %s414 = vtos %v413
    %s415 = smul.f32 %s414, %s381
    %s416 = sadd.f32 %s305, %s415
    %v417 = vmul.f32 %v99, %v346
    %v418 = vmul.f32 %v101, %v347
    %v419 = vsel %vm127, %v417, 0.0
    %v420 = vsel %vm127, %v418, 0.0
    %v421 = vadd.f32 %v419, %v420
    %422 = vadd.xlane.f32.xlu0 %v421
    %v423 = vpop.xlane.xlu0 %422
    %v424 = vrot.slane %v423, 4
    %v425 = vadd.f32 %v423, %v424
    %v426 = vrot.slane %v425, 2
    %v427 = vadd.f32 %v425, %v426
    %v428 = vrot.slane %v427, 1
    %v429 = vadd.f32 %v427, %v428
    %s430 = vtos %v429
    %s431 = smul.f32 %s430, %s381
    %s432 = sadd.f32 %s337, %s431
    %v433 = vmul.f32 %v105, %v346
    %v434 = vmul.f32 %v107, %v347
    %v435 = vsel %vm127, %v433, 0.0
    %v436 = vsel %vm127, %v434, 0.0
    %v437 = vadd.f32 %v435, %v436
    %438 = vadd.xlane.f32.xlu0 %v437
    %v439 = vpop.xlane.xlu0 %438
    %v440 = vrot.slane %v439, 4
    %v441 = vadd.f32 %v439, %v440
    %v442 = vrot.slane %v441, 2
    %v443 = vadd.f32 %v441, %v442
    %v444 = vrot.slane %v443, 1
    %v445 = vadd.f32 %v443, %v444
    %s446 = vtos %v445
    %s447 = smul.f32 %s446, %s400
    %s448 = sadd.f32 %s432, %s447
    %s449 = smul.f32 %s416, 0.05
    %s450 = sadd.f32 %s449, %s448
    %s451 = scalar_lea.smem [#allocation2], 0
    %452 = sst [smem:[%s451]] %s450
    // Predicated region
    $region10: #{_yolo_loss_device.1} parent=1 // pred_check
      _
    $region11: #{_yolo_loss_device.1} parent=1 // pred_check_branch
      %454 = sbr.rel (0) target = $region13
    $region12: #{_yolo_loss_device.1} parent=1 // pred_region
      %456 = vsyncadd [#allocation3], 0
      %s458 = sshll.u32 %s2, 4
      %s459 = int_to_ptr.hbm [resolvable:$true] %s458
      %461 = dma.smem_to_hbm [#allocation2], 16, %s459, [#allocation3]
    $region13: #{_yolo_loss_device.1} parent=1 // pred_fallthru
      _
    // Predicated region
    $region14: #{_yolo_loss_device.1} parent=1 // pred_check
      _
    $region15: #{_yolo_loss_device.1} parent=1 // pred_check_branch
      %463 = sbr.rel (0) target = $region17
    $region16: #{_yolo_loss_device.1} parent=1 // pred_region
      %465 = dma.done [#allocation3], 16
    $region17: #{_yolo_loss_device.1} parent=1 // pred_fallthru
      _
    %466 = sfence
    %467 = vsyncpa [#allocation3], 1

</llo_original>
